<compile_context>
chip_gen: v7x
topology: tpu7x:2x2x1
jax: 0.10.0
libtpu: 0.0.40
codegen_flags: <defaults>
</compile_context>

<pallas_src>
import jax
import jax.numpy as jnp
from jax import lax
from jax.experimental import pallas as pl
from jax.experimental.pallas import tpu as pltpu


def _embedding_kernel(ids_ref, w_cls_ref, pos_ref, out_ref):
    # ids_ref:   (TS, 1)      int32 token ids for this (seq-chunk, batch) tile
    # w_cls_ref: (vocab, dim) class-embedding table, resident in VMEM
    # pos_ref:   (TS, dim)    positional rows for this seq chunk
    # out_ref:   (TS, dim)    output tile (batch dim squeezed)
    ts, _ = out_ref.shape
    vocab = w_cls_ref.shape[0]

    ids_col = ids_ref[...]                                    # (TS, 1)
    tok_iota = lax.broadcasted_iota(jnp.int32, (ts, vocab), 1)
    one_hot = (tok_iota == ids_col).astype(w_cls_ref.dtype)   # (TS, vocab)

    # MXU gather: one_hot @ table, f32 accumulation. OOB ids -> zero row.
    gathered = jnp.dot(one_hot, w_cls_ref[...],
                       preferred_element_type=jnp.float32)    # (TS, dim) f32

    out_ref[...] = (gathered + pos_ref[...].astype(jnp.float32)).astype(out_ref.dtype)


def _vmem_capacity_bytes():
    try:
        return int(pltpu.get_tpu_info().vmem_capacity_bytes)
    except Exception:
        return 64 * 1024 * 1024  # conservative (v7x per-TC) fallback


def embedding_forward(ids, w_cls, w_pos, *, tokens_per_step=None):
    """ids: (B, S) int; w_cls: (vocab, dim); w_pos: (max_len, dim) -> (B, S, dim)."""
    B, S = ids.shape
    vocab, dim = w_cls.shape
    max_len, dim_p = w_pos.shape
    # The PyTorch module adds the full (max_len, dim) pos table, so S == max_len.
    assert S == max_len and dim == dim_p

    itemsize = jnp.dtype(w_cls.dtype).itemsize

    def vmem_bytes(ts):
        table = 2 * vocab * dim * itemsize          # resident table, double-buffered
        pos_t = 2 * ts * dim * itemsize             # pos tile, double-buffered
        out_t = 2 * ts * dim * itemsize             # out tile, double-buffered
        ids_t = 2 * ts * 4                          # ids tile, double-buffered
        interm = ts * vocab * itemsize + ts * dim * 4   # one-hot + f32 accumulator
        return table + pos_t + out_t + ids_t + interm

    capacity = _vmem_capacity_bytes()

    if tokens_per_step is not None:
        ts = tokens_per_step
        assert S % ts == 0, "tokens_per_step must divide the sequence length"
    else:
        # Largest sublane-friendly chunk that divides S and fits the VMEM budget.
        budget = int(0.75 * capacity)
        ts = None
        for cand in (1024, 512, 256, 128, 64, 32, 16, 8):
            if S % cand == 0 and vmem_bytes(cand) <= budget:
                ts = cand
                break
        if ts is None:
            ts = S   # short / odd sequences: one chunk == whole sequence

    ids3 = ids.astype(jnp.int32).reshape(B, S, 1)

    # Batch innermost -> positional chunk is DMA'd once per seq chunk, not per (b, sc).
    grid = (S // ts, B)

    grid_spec = pltpu.PrefetchScalarGridSpec(
        num_scalar_prefetch=0,
        grid=grid,
        in_specs=[
            # Per-chunk token ids; batch dim squeezed -> kernel sees (ts, 1).
            pl.BlockSpec((None, ts, 1), lambda sc, b: (b, sc, 0)),
            # Class table: resident in VMEM (constant block index -> DMA'd once).
            pl.BlockSpec((vocab, dim), lambda sc, b: (0, 0)),
            # Positional rows: keyed only by the seq chunk (constant across b).
            pl.BlockSpec((ts, dim), lambda sc, b: (sc, 0)),
        ],
        out_specs=pl.BlockSpec((None, ts, dim), lambda sc, b: (b, sc, 0)),
    )

    vmem_limit = int(min(capacity, max(16 * 1024 * 1024, 2 * vmem_bytes(ts))))

    return pl.pallas_call(
        _embedding_kernel,
        grid_spec=grid_spec,
        out_shape=jax.ShapeDtypeStruct((B, S, dim), w_cls.dtype),
        compiler_params=pltpu.CompilerParams(
            dimension_semantics=("parallel", "parallel"),
            vmem_limit_bytes=vmem_limit,
        ),
    )(ids3, w_cls, w_pos)


if __name__ == "__main__":
    # Small, deterministic setup consistent with Embedding(vocab_size, max_len, dim)
    vocab_size, max_len, dim = 32, 8, 128
    batch = 2

    key = jax.random.PRNGKey(0)
    k_cls, k_pos, k_ids = jax.random.split(key, 3)

    # Deterministic "nn.Embedding"-style weights (N(0,1) init, as in PyTorch default)
    w_cls = jax.random.normal(k_cls, (vocab_size, dim), dtype=jnp.float32)
    w_pos = jax.random.normal(k_pos, (max_len, dim), dtype=jnp.float32)

    ids = jax.random.randint(k_ids, (batch, max_len), 0, vocab_size, dtype=jnp.int32)

    out = embedding_forward(ids, w_cls, w_pos)
    out = jax.block_until_ready(out)

    # Pure-JAX reference check
    ref = w_cls[ids] + w_pos[None, :, :]
    assert out.shape == (batch, max_len, dim)
    assert jnp.allclose(out, ref, atol=1e-6), "mismatch vs reference"

    print("KERNEL_OK")
</pallas_src>

<mosaic_0001>
module attributes {stable_mosaic.version = 11 : i64} {
  func.func @_embedding_kernel(%arg0: i32, %arg1: i32, %arg2: memref<1x8x1xi32, #tpu.memory_space<vmem>>, %arg3: memref<32x128xf32, #tpu.memory_space<vmem>>, %arg4: memref<8x128xf32, #tpu.memory_space<vmem>>, %arg5: memref<1x8x128xf32, #tpu.memory_space<vmem>>) attributes {dimension_semantics = [#tpu.dimension_semantics<parallel>, #tpu.dimension_semantics<parallel>], iteration_bounds = array<i64: 1, 2>, scalar_prefetch = 0 : i64, scratch_operands = 0 : i64, tpu.core_type = #tpu.core_type<tc>, window_params = [{transform_indices = @transform_0, window_bounds = array<i64: 1, 8, 1>}, {pipeline_mode = #tpu.pipeline_mode<synchronous>, transform_indices = @transform_1, window_bounds = array<i64: 32, 128>}, {transform_indices = @transform_2, window_bounds = array<i64: 8, 128>}, {transform_indices = @transform_3, window_bounds = array<i64: 1, 8, 128>}]} {
    %c0 = arith.constant 0 : index
    %c0_0 = arith.constant 0 : index
    %c0_1 = arith.constant 0 : index
    %0 = vector.load %arg2[%c0, %c0_0, %c0_1] : memref<1x8x1xi32, #tpu.memory_space<vmem>>, vector<1x8x1xi32>
    %1 = vector.shape_cast %0 : vector<1x8x1xi32> to vector<8x1xi32>
    %2 = tpu.iota {dimensions = array<i32: 1>} : vector<8x32xi32>
    %3 = vector.broadcast %1 : vector<8x1xi32> to vector<8x32xi32>
    %4 = arith.cmpi eq, %2, %3 : vector<8x32xi32>
    %5 = arith.extui %4 : vector<8x32xi1> to vector<8x32xi32>
    %6 = arith.sitofp %5 : vector<8x32xi32> to vector<8x32xf32>
    %c0_2 = arith.constant 0 : index
    %c0_3 = arith.constant 0 : index
    %7 = vector.load %arg3[%c0_2, %c0_3] : memref<32x128xf32, #tpu.memory_space<vmem>>, vector<32x128xf32>
    %cst = arith.constant dense<0.000000e+00> : vector<8x128xf32>
    %8 = tpu.matmul %6, %7, %cst {dimension_numbers = #tpu.dot_dimension_numbers<[1], [0], [0], [1], [0, 0, 1, 1], [], []>} : vector<8x32xf32>, vector<32x128xf32>, vector<8x128xf32> -> vector<8x128xf32>
    %c0_4 = arith.constant 0 : index
    %c0_5 = arith.constant 0 : index
    %9 = vector.load %arg4[%c0_4, %c0_5] : memref<8x128xf32, #tpu.memory_space<vmem>>, vector<8x128xf32>
    %10 = arith.addf %8, %9 : vector<8x128xf32>
    %c0_6 = arith.constant 0 : index
    %c0_7 = arith.constant 0 : index
    %c0_8 = arith.constant 0 : index
    %11 = vector.load %arg5[%c0_6, %c0_7, %c0_8] : memref<1x8x128xf32, #tpu.memory_space<vmem>>, vector<1x8x128xf32>
    %12 = vector.shape_cast %11 : vector<1x8x128xf32> to vector<8x128xf32>
    %13 = vector.shape_cast %10 : vector<8x128xf32> to vector<1x8x128xf32>
    tpu.vector_store %arg5[%c0_6, %c0_7, %c0_8], %13 {strides = array<i32>} : memref<1x8x128xf32, #tpu.memory_space<vmem>>, vector<1x8x128xf32>,
    return
  }
  func.func @transform_0(%arg0: i32, %arg1: i32) -> (i32, i32, i32) {
    %c0_i32 = arith.constant 0 : i32
    %c0_i32_0 = arith.constant 0 : i32
    return %arg1, %arg0, %c0_i32 : i32, i32, i32
  }
  func.func @transform_1(%arg0: i32, %arg1: i32) -> (i32, i32) {
    %c0_i32 = arith.constant 0 : i32
    %c0_i32_0 = arith.constant 0 : i32
    %c0_i32_1 = arith.constant 0 : i32
    return %c0_i32, %c0_i32_0 : i32, i32
  }
  func.func @transform_2(%arg0: i32, %arg1: i32) -> (i32, i32) {
    %c0_i32 = arith.constant 0 : i32
    %c0_i32_0 = arith.constant 0 : i32
    return %arg0, %c0_i32 : i32, i32
  }
  func.func @transform_3(%arg0: i32, %arg1: i32) -> (i32, i32, i32) {
    %c0_i32 = arith.constant 0 : i32
    %c0_i32_0 = arith.constant 0 : i32
    return %arg1, %arg0, %c0_i32 : i32, i32, i32
  }
}

</mosaic_0001>

<llo_original>
// kernel: tpu_custom_call.1
$region0: #{tpu_custom_call.1}
  #allocation0 [shape = 'u32[]', space=smem, size = 0x4, offset = 0x4, fixed_abs, tag = 'smem constant byte address 0x4 - core index']
  #allocation1 [shape = 'u32[144,128]{1,0:T(1,128)}', space=vmem, size = 0x12000, scoped, tag = 'internal scratch']
  %s0 = inlined_call_operand.vmem [shape: s32[2,8,1], index: 0, kind: input, shape index: {}]
  %s1 = inlined_call_operand.hbm [shape: f32[32,128], index: 1, kind: input, shape index: {}]
  %s2 = inlined_call_operand.vmem [shape: f32[8,128], index: 2, kind: input, shape index: {}]
  %s3 = inlined_call_operand.hbm [shape: f32[2,8,128], index: 3, kind: output, shape index: {}]
  %s4 = sld [smem:[#allocation0]]
  $region49: #{tpu_custom_call.1} parent=0
    _
  %s6 = ssub.s32 1, %s4
  %s7 = scalar_select 0, %s6, %s4
  $region1: #{tpu_custom_call.1} parent=0
    #allocation2 [shape = 'u8[16384]{0}', space=vmem, size = 0x4000, scoped, tag = 'input window, operand 1, single buffered']
    #allocation3 [shape = 's32[2]{0}', space=sflag, size = 0x8, scoped, tag = 'scoped memory for tpu_custom_call.1']
    #allocation4 [shape = 's32[2]{0}', space=sflag, size = 0x8, scoped, tag = 'scoped memory for tpu_custom_call.1']
    #allocation5 [shape = 'u8[8192]{0}', space=vmem, size = 0x2000, scoped, tag = 'output window, operand 0']
    %8 = vsyncpa [#allocation3], 0
    %9 = vsyncpa [#allocation4], 0
    %s10 = scalar_lea.sflag [#allocation4], 1
    %11 = vsyncpa %s10, 0
    loop: start=0, step=1, limit=4
    $region2: #{tpu_custom_call.1} parent=1 // loop_pre_header
      _
    $region3: #{tpu_custom_call.1} parent=1 // loop_header
      %s13 = sphi 0, %s17
      %p14 = scmp.ge.s32.totalorder %s13, 4
      %s20 = sphi 0, %s32
      %s21 = sphi 0, %s28
      %s22 = sphi 0, %s20
      %s23 = sphi 0, %s21
      %s24 = sphi 0, %s22
      %s25 = sphi 0, %s23
      %s37 = sphi 0, %s39
      %s40 = sphi 0, %s37
      %s41 = sphi 0, %s40
      %s57 = sphi 0, %s41
      %s61 = sphi 0, %s61
      %s63 = sphi 0, %s61
      %s64 = sphi 0, %s63
      %s78 = sphi 0, %s64
      %s84 = sphi 0, %s86
      %s87 = sphi 0, %s84
      %s88 = sphi 0, %s87
      %s104 = sphi 0, %s88
      %s112 = sphi 0, %s114
      %s115 = sphi 0, %s112
      %s116 = sphi 0, %s115
      %s132 = sphi 0, %s116
    $region4: #{tpu_custom_call.1} parent=1 // loop_header_branch
      %16 = sbr.rel (%p14) target = $region8
    $region5: #{tpu_custom_call.1} parent=1 // loop_body
      %s18 = ssub.s32 %s13, 1
      %s19 = ssub.s32 %s13, 2
      %s26 = sadd.s32 1, %s21
      %p27 = scmp.ge.s32.totalorder %s26, 2
      %s28 = scalar_select %p27, 0, %s26
      %s29 = sadd.s32 1, %s20
      %s30 = scalar_select %p27, %s29, %s20
      %p31 = scmp.ge.s32.totalorder %s30, 1
      %s32 = scalar_select %p31, 0, %s30
      %s33 = ssub.s32 %s21, %s28
      %s34 = ssub.s32 %s20, %s32
      %s35 = sor.u32 %s33, %s34
      %p36 = scmp.eq.s32.totalorder %s35, 0
      %s38 = sadd.s32 %s37, 1
      %s39 = scalar_select %p36, %s37, %s38
      %p42 = pneg %p36
      %p43 = scmp.eq.s32.totalorder %s13, 1
      %p44 = por %p42, %p43
      %p45 = scmp.ne.s32.totalorder %s37, %s40
      %p46 = scmp.eq.s32.totalorder %s13, 0
      %p47 = por %p45, %p46
      %p48 = scmp.ne.s32.totalorder %s37, %s40
      %p49 = scmp.eq.s32.totalorder %s18, 1
      %p50 = por %p48, %p49
      %p51 = scmp.ne.s32.totalorder %s40, %s41
      %p52 = scmp.eq.s32.totalorder %s18, 0
      %p53 = por %p51, %p52
      %p54 = scmp.ne.s32.totalorder %s40, %s41
      %p55 = scmp.eq.s32.totalorder %s19, 1
      %p56 = por %p54, %p55
      %p58 = scmp.ne.s32.totalorder %s41, %s57
      %p59 = scmp.eq.s32.totalorder %s19, 0
      %p60 = por %p58, %p59
      %s62 = sadd.s32 %s61, 1
      %p65 = scmp.eq.s32.totalorder %s13, 1
      %p66 = scmp.ne.s32.totalorder %s61, %s63
      %p67 = scmp.eq.s32.totalorder %s13, 0
      %p68 = por %p66, %p67
      %p69 = scmp.ne.s32.totalorder %s61, %s63
      %p70 = scmp.eq.s32.totalorder %s18, 1
      %p71 = por %p69, %p70
      %p72 = scmp.ne.s32.totalorder %s63, %s64
      %p73 = scmp.eq.s32.totalorder %s18, 0
      %p74 = por %p72, %p73
      %p75 = scmp.ne.s32.totalorder %s63, %s64
      %p76 = scmp.eq.s32.totalorder %s19, 1
      %p77 = por %p75, %p76
      %p79 = scmp.ne.s32.totalorder %s64, %s78
      %p80 = scmp.eq.s32.totalorder %s19, 0
      %p81 = por %p79, %p80
      %s82 = ssub.s32 %s20, %s32
      %p83 = scmp.eq.s32.totalorder %s82, 0
      %s85 = sadd.s32 %s84, 1
      %s86 = scalar_select %p83, %s84, %s85
      %p89 = pneg %p83
      %p90 = scmp.eq.s32.totalorder %s13, 1
      %p91 = por %p89, %p90
      %p92 = scmp.ne.s32.totalorder %s84, %s87
      %p93 = scmp.eq.s32.totalorder %s13, 0
      %p94 = por %p92, %p93
      %p95 = scmp.ne.s32.totalorder %s84, %s87
      %p96 = scmp.eq.s32.totalorder %s18, 1
      %p97 = por %p95, %p96
      %p98 = scmp.ne.s32.totalorder %s87, %s88
      %p99 = scmp.eq.s32.totalorder %s18, 0
      %p100 = por %p98, %p99
      %p101 = scmp.ne.s32.totalorder %s87, %s88
      %p102 = scmp.eq.s32.totalorder %s19, 1
      %p103 = por %p101, %p102
      %p105 = scmp.ne.s32.totalorder %s88, %s104
      %p106 = scmp.eq.s32.totalorder %s19, 0
      %p107 = por %p105, %p106
      %s108 = ssub.s32 %s21, %s28
      %s109 = ssub.s32 %s20, %s32
      %s110 = sor.u32 %s108, %s109
      %p111 = scmp.eq.s32.totalorder %s110, 0
      %s113 = sadd.s32 %s112, 1
      %s114 = scalar_select %p111, %s112, %s113
      %p117 = pneg %p111
      %p118 = scmp.eq.s32.totalorder %s13, 1
      %p119 = por %p117, %p118
      %p120 = scmp.ne.s32.totalorder %s112, %s115
      %p121 = scmp.eq.s32.totalorder %s13, 0
      %p122 = por %p120, %p121
      %p123 = scmp.ne.s32.totalorder %s112, %s115
      %p124 = scmp.eq.s32.totalorder %s18, 1
      %p125 = por %p123, %p124
      %p126 = scmp.ne.s32.totalorder %s115, %s116
      %p127 = scmp.eq.s32.totalorder %s18, 0
      %p128 = por %p126, %p127
      %p129 = scmp.ne.s32.totalorder %s115, %s116
      %p130 = scmp.eq.s32.totalorder %s19, 1
      %p131 = por %p129, %p130
      %p133 = scmp.ne.s32.totalorder %s116, %s132
      %p134 = scmp.eq.s32.totalorder %s19, 0
      %p135 = por %p133, %p134
      %p136 = scmp.le.s32.totalorder 1, %s13
      %p137 = scmp.lt.s32.totalorder %s13, 3
      %p138 = pnand %p136, %p137
      %p139 = pneg %p138
      // Predicated region
      $region9: #{tpu_custom_call.1} parent=5 // pred_check
        _
      $region10: #{tpu_custom_call.1} parent=5 // pred_check_branch
        %141 = sbr.rel (%p138) target = $region12
      $region11: #{tpu_custom_call.1} parent=5 // pred_region
        %s142 = ssub.s32 %s13, 1
        // Predicated region
        $region13: #{tpu_custom_call.1} parent=11 // pred_check
          %p143 = pneg %p74
        $region14: #{tpu_custom_call.1} parent=11 // pred_check_branch
          %145 = sbr.rel (%p143) target = $region16
        $region15: #{tpu_custom_call.1} parent=11 // pred_region
          %s147 = ssub.s32 512, 512
          %148 = vsyncadd [#allocation3], %s147
          %s149 = sshll.u32 [#allocation2], 4
          %s150 = int_to_ptr.vmem [resolvable:$true] %s149
          %155 = dma.hbm_to_vmem [thread:$0]  %s1, 512, %s150, [#allocation3], 128, 128, 8
        $region16: #{tpu_custom_call.1} parent=11 // pred_fallthru
          _
        // Predicated region
        $region17: #{tpu_custom_call.1} parent=11 // pred_check
          %p156 = pneg %p100
        $region18: #{tpu_custom_call.1} parent=11 // pred_check_branch
          %158 = sbr.rel (%p156) target = $region20
        $region19: #{tpu_custom_call.1} parent=11 // pred_region
          %p159 = scmp.lt.s32.totalorder %s22, 0
          %s160 = scalar_select %p159, %s22, 0
          %s161 = smul.addr %s160, 8
          %s162 = scalar_lea.vmem %s2, %s161
        $region20: #{tpu_custom_call.1} parent=11 // pred_fallthru
          _
      $region12: #{tpu_custom_call.1} parent=5 // pred_fallthru
        _
      %p163 = scmp.lt.s32.totalorder %s13, 2
      // Predicated region
      $region21: #{tpu_custom_call.1} parent=5 // pred_check
        %p164 = pneg %p163
      $region22: #{tpu_custom_call.1} parent=5 // pred_check_branch
        %166 = sbr.rel (%p164) target = $region24
      $region23: #{tpu_custom_call.1} parent=5 // pred_region
        // Predicated region
        $region25: #{tpu_custom_call.1} parent=23 // pred_check
          %p167 = pneg %p47
        $region26: #{tpu_custom_call.1} parent=23 // pred_check_branch
          %169 = sbr.rel (%p167) target = $region28
        $region27: #{tpu_custom_call.1} parent=23 // pred_region
          %p170 = scmp.lt.s32.totalorder %s21, 1
          %s171 = scalar_select %p170, %s21, 1
          %p172 = scmp.lt.s32.totalorder %s20, 0
          %s173 = scalar_select %p172, %s20, 0
          %s174 = sadd.s32 %s173, %s171
          %s175 = smul.addr %s174, 8
          %s176 = scalar_lea.vmem %s0, %s175
        $region28: #{tpu_custom_call.1} parent=23 // pred_fallthru
          _
      $region24: #{tpu_custom_call.1} parent=5 // pred_fallthru
        _
      %p177 = scmp.le.s32.totalorder 1, %s13
      %p178 = scmp.lt.s32.totalorder %s13, 3
      %p179 = pnand %p177, %p178
      %p180 = pneg %p179
      // Predicated region
      $region29: #{tpu_custom_call.1} parent=5 // pred_check
        _
      $region30: #{tpu_custom_call.1} parent=5 // pred_check_branch
        %182 = sbr.rel (%p179) target = $region32
      $region31: #{tpu_custom_call.1} parent=5 // pred_region
        %s183 = ssub.s32 %s13, 1
        // Predicated region
        $region33: #{tpu_custom_call.1} parent=31 // pred_check
          %p184 = pneg %p74
        $region34: #{tpu_custom_call.1} parent=31 // pred_check_branch
          %186 = sbr.rel (%p184) target = $region36
        $region35: #{tpu_custom_call.1} parent=31 // pred_region
          %187 = dma.done [#allocation3], 512
        $region36: #{tpu_custom_call.1} parent=31 // pred_fallthru
          _
        %p188 = scmp.lt.s32.totalorder %s23, 1
        %s189 = scalar_select %p188, %s23, 1
        %p190 = scmp.lt.s32.totalorder %s22, 0
        %s191 = scalar_select %p190, %s22, 0
        %s192 = sadd.s32 %s191, %s189
        %s193 = smul.addr %s192, 8
        %s194 = scalar_lea.vmem %s0, %s193
        %p195 = pneg %p53
        %p196 = pneg %p50
        %p197 = pneg %p74
        %p198 = pneg %p71
        %p199 = scmp.lt.s32.totalorder %s22, 0
        %s200 = scalar_select %p199, %s22, 0
        %s201 = smul.addr %s200, 8
        %s202 = scalar_lea.vmem %s2, %s201
        %p203 = pneg %p100
        %p204 = pneg %p97
        %p205 = pneg %p128
        %p206 = pneg %p125
        %s207 = sand.u32 %s115, 1
        %s208 = scalar_lea.sflag [#allocation4], %s207
        %s209 = sand.u32 %s115, 1
        %s210 = smul.addr %s209, 8
        %s211 = scalar_lea.vmem [#allocation5], %s210
        %p212 = scmp.lt.s32.totalorder %s23, 1
        %s213 = scalar_select %p212, %s23, 1
        %p214 = scmp.lt.s32.totalorder %s22, 0
        %s215 = scalar_select %p214, %s22, 0
        %s216 = sadd.s32 %s215, %s213
        %s217 = smul.addr %s216, 8
        %s218 = scalar_lea.vmem %s0, %s217
        %p219 = scmp.lt.s32.totalorder %s22, 0
        %s220 = scalar_select %p219, %s22, 0
        %s221 = smul.addr %s220, 8
        %s222 = scalar_lea.vmem %s2, %s221
        %v223 = vld [vmem:[%s218] sm:$0xff]
        %v224 = vlaneseq
        %v225 = vand.u32 %v224, 127
        %226 = vset.pattern.permute.xlu0 0
        %227 = vperm.xlu0 %226, %v223
        %v228 = vpop.permute.xlu0 %227
        %vm229 = vcmp.eq.s32.totalorder %v225, %v228
        %v230 = vsel %vm229, 1, 0
        %v231 = vcvt.s32.f32 %v230
        %v232 = vld [vmem:[#allocation2] sm:$0xff]
        %v233 = vld [vmem:[#allocation2 + $0x8] sm:$0xff]
        %v234 = vld [vmem:[#allocation2 + $0x10] sm:$0xff]
        %v235 = vld [vmem:[#allocation2 + $0x18] sm:$0xff]
        %v236 = vld [vmem:[%s222] sm:$0xff]
        %vm237 = vcmask 261120
        %v239 = vsel %vm237, %v231, 0
        %241 = vmatprep.subr.mxu0 0.0
        %242 = vmatpush1.msra.mxu0 %v232
        %243 = vmatprep.subr.mxu0 0.0
        %244 = vmatpush1.msra.mxu0 %v233
        %245 = vmatprep.subr.mxu0 0.0
        %246 = vmatpush1.msra.mxu0 %v234
        %247 = vmatprep.subr.mxu0 0.0
        %248 = vmatpush1.msra.mxu0 %v235
        %249 = vmatprep.subr.mxu0 0.0
        %250 = vmatpush1.msra.mxu0 0.0
        %251 = vmatprep.subr.mxu0 0.0
        %252 = vmatpush1.msra.mxu0 0.0
        %253 = vmatprep.subr.mxu0 0.0
        %254 = vmatpush1.msra.mxu0 0.0
        %255 = vmatprep.subr.mxu0 0.0
        %256 = vmatpush1.msra.mxu0 0.0
        %257 = vmatprep.subr.mxu0 0.0
        %258 = vmatpush1.msra.mxu0 0.0
        %259 = vmatprep.subr.mxu0 0.0
        %260 = vmatpush1.msra.mxu0 0.0
        %261 = vmatprep.subr.mxu0 0.0
        %262 = vmatpush1.msra.mxu0 0.0
        %263 = vmatprep.subr.mxu0 0.0
        %264 = vmatpush1.msra.mxu0 0.0
        %265 = vmatprep.subr.mxu0 0.0
        %266 = vmatpush1.msra.mxu0 0.0
        %267 = vmatprep.subr.mxu0 0.0
        %268 = vmatpush1.msra.mxu0 0.0
        %269 = vmatprep.subr.mxu0 0.0
        %270 = vmatpush1.msra.mxu0 0.0
        %271 = vmatprep.subr.mxu0 0.0
        %272 = vmatpush1.msra.mxu0 0.0
        %273 = vmatprep.subr.mxu0 0.0
        %274 = vmatpush1.msra.mxu0 0.0
        %275 = vmatprep.subr.mxu0 0.0
        %276 = vmatpush1.msra.mxu0 0.0
        %277 = vmatprep.subr.mxu0 0.0
        %278 = vmatpush1.msra.mxu0 0.0
        %279 = vmatprep.subr.mxu0 0.0
        %280 = vmatpush1.msra.mxu0 0.0
        %281 = vmatprep.subr.mxu0 0.0
        %282 = vmatpush1.msra.mxu0 0.0
        %283 = vmatprep.subr.mxu0 0.0
        %284 = vmatpush1.msra.mxu0 0.0
        %285 = vmatprep.subr.mxu0 0.0
        %286 = vmatpush1.msra.mxu0 0.0
        %287 = vmatprep.subr.mxu0 0.0
        %288 = vmatpush1.msra.mxu0 0.0
        %289 = vmatprep.subr.mxu0 0.0
        %290 = vmatpush1.msra.mxu0 0.0
        %291 = vmatprep.subr.mxu0 0.0
        %292 = vmatpush1.msra.mxu0 0.0
        %293 = vmatprep.subr.mxu0 0.0
        %294 = vmatpush1.msra.mxu0 0.0
        %295 = vmatprep.subr.mxu0 0.0
        %296 = vmatpush1.msra.mxu0 0.0
        %297 = vmatprep.subr.mxu0 0.0
        %298 = vmatpush1.msra.mxu0 0.0
        %299 = vmatprep.subr.mxu0 0.0
        %300 = vmatpush1.msra.mxu0 0.0
        %301 = vmatprep.subr.mxu0 0.0
        %302 = vmatpush1.msra.mxu0 0.0
        %303 = vmatprep.subr.mxu0 0.0
        %304 = vmatpush1.msra.mxu0 0.0
        %305 = vmatprep.mubr.f32.mxu0 0.0
        %306 = vmatmul.mubr.f32.gmra.mrb[0].mxu0 %v239
        %v307 = vpop.f32.mrb[0].mxu0
        %v308 = vadd.f32 %v236, %v307
        %v309 = vpop.f32.mrb[0].mxu0
        %310 = vdwg.mxu0
        %311 = vst [vmem:[%s211] sm:$0xff] %v308
        %s312 = sand.u32 %s115, 1
        %s313 = scalar_lea.sflag [#allocation4], %s312
        %s314 = sand.u32 %s115, 1
        %s315 = smul.addr %s314, 8
        %s316 = scalar_lea.vmem [#allocation5], %s315
        // Predicated region
        $region37: #{tpu_custom_call.1} parent=31 // pred_check
          %p317 = pneg %p125
        $region38: #{tpu_custom_call.1} parent=31 // pred_check_branch
          %319 = sbr.rel (%p317) target = $region40
        $region39: #{tpu_custom_call.1} parent=31 // pred_region
          %s321 = ssub.s32 128, 128
          %322 = vsyncadd %s313, %s321
          %s323 = sadd.s32 %s22, %s23
          %s324 = smul.addr %s323, 128
          %s325 = scalar_lea.hbm %s3, %s324
          %s327 = sshll.u32 %s316, 4
          %s328 = int_to_ptr.vmem [resolvable:$true] %s327
          %330 = dma.vmem_to_hbm [thread:$0]  %s328, 128, %s325, %s313
        $region40: #{tpu_custom_call.1} parent=31 // pred_fallthru
          _
      $region32: #{tpu_custom_call.1} parent=5 // pred_fallthru
        _
      %p331 = scmp.le.s32.totalorder 2, %s13
      // Predicated region
      $region41: #{tpu_custom_call.1} parent=5 // pred_check
        %p332 = pneg %p331
      $region42: #{tpu_custom_call.1} parent=5 // pred_check_branch
        %334 = sbr.rel (%p332) target = $region44
      $region43: #{tpu_custom_call.1} parent=5 // pred_region
        %s335 = ssub.s32 %s13, 2
        // Predicated region
        $region45: #{tpu_custom_call.1} parent=43 // pred_check
          %p336 = pneg %p131
        $region46: #{tpu_custom_call.1} parent=43 // pred_check_branch
          %338 = sbr.rel (%p336) target = $region48
        $region47: #{tpu_custom_call.1} parent=43 // pred_region
          %s339 = sand.u32 %s116, 1
          %s340 = scalar_lea.sflag [#allocation4], %s339
          %s341 = sand.u32 %s116, 1
          %s342 = smul.addr %s341, 8
          %s343 = scalar_lea.vmem [#allocation5], %s342
          %344 = dma.done %s340, 128
        $region48: #{tpu_custom_call.1} parent=43 // pred_fallthru
          _
      $region44: #{tpu_custom_call.1} parent=5 // pred_fallthru
        _
    $region6: #{tpu_custom_call.1} parent=1 // loop_footer
      %s17 = sadd.s32 1, %s13
    $region7: #{tpu_custom_call.1} parent=1 // loop_footer_branch
      %12 = sbr.rel target = $region3
    $region8: #{tpu_custom_call.1} parent=1 // loop_exit
      _
    %345 = vsyncpa [#allocation3], 1
    %s346 = scalar_lea.sflag [#allocation3], 1
    %347 = vsyncpa %s346, 1
    %348 = vsyncpa [#allocation4], 1
    %s349 = scalar_lea.sflag [#allocation4], 1
    %350 = vsyncpa %s349, 1

</llo_original>
